<compile_context>
chip_gen: v7x
topology: tpu7x:2x2x1
jax: 0.10.0
libtpu: 0.0.40
codegen_flags: <defaults>
</compile_context>

<pallas_src>
import functools

import jax
import jax.numpy as jnp
from jax.experimental import pallas as pl
from jax.experimental.pallas import tpu as pltpu

LANE = 128     # lane width: feature dims padded to a multiple of this
TILE_M = 128   # node-row tile (MXU row dim; >=2 tiles lets v7x use both TCs)


def _round_up(v, m):
    return (v + m - 1) // m * m


def _pad2d(a, rows, cols):
    return jnp.zeros((rows, cols), a.dtype).at[: a.shape[0], : a.shape[1]].set(a)


def _vmem_limit_bytes(est):
    # never below the common scoped default, capped at v7x physical VMEM
    return int(min(64 << 20, max(32 << 20, 2 * est)))


# -----------------------------------------------------------------------------
# Kernel 1: one SAGEConv layer (+ ReLU) for a row tile of nodes (tiled path).
# -----------------------------------------------------------------------------
def _sage_layer_kernel(a_ref, x_ref, w_ref, b_ref, o_ref, *, tile_m):
    # a_ref: (tile_m, N_pad) bf16   normalized adjacency rows for this tile
    # x_ref: (N_pad, F_pad)  bf16   full node features (grid-invariant block)
    # w_ref: (2*F_pad, H_pad) bf16  stacked [W_l; W_r]
    # b_ref: (1, H_pad)      f32    neighbor-branch bias (zero-padded lanes)
    # o_ref: (tile_m, H_pad)        output tile
    i = pl.program_id(0)
    agg = jnp.dot(a_ref[...], x_ref[...],
                  preferred_element_type=jnp.float32)        # mean aggregation
    row0 = pl.multiple_of(i * tile_m, tile_m)
    x_tile = x_ref[pl.ds(row0, tile_m), :]                   # root features (view)
    z = jnp.concatenate([agg.astype(jnp.bfloat16), x_tile], axis=1)
    h = jnp.dot(z, w_ref[...], preferred_element_type=jnp.float32) + b_ref[...]
    o_ref[...] = jnp.maximum(h, 0.0).astype(o_ref.dtype)     # relu_()


def sage_conv_relu(adj, x, w_stack, b, *, tile_m=TILE_M, out_dtype=jnp.bfloat16):
    """One SAGEConv layer + ReLU as a row-tiled Pallas call."""
    n_pad, f_pad = x.shape
    h_pad = w_stack.shape[1]
    assert n_pad % tile_m == 0

    est = (2 * tile_m * n_pad * 2          # A tile (double-buffered, bf16)
           + 2 * n_pad * f_pad * 2         # full X (double-buffered, bf16)
           + 2 * 2 * f_pad * h_pad * 2     # stacked W
           + 2 * h_pad * 4                 # bias
           + 2 * tile_m * h_pad * jnp.dtype(out_dtype).itemsize
           + tile_m * (2 * f_pad + h_pad) * 4)   # in-kernel temporaries

    return pl.pallas_call(
        functools.partial(_sage_layer_kernel, tile_m=tile_m),
        out_shape=jax.ShapeDtypeStruct((n_pad, h_pad), out_dtype),
        grid_spec=pltpu.PrefetchScalarGridSpec(
            num_scalar_prefetch=0,
            grid=(n_pad // tile_m,),
            in_specs=[
                pl.BlockSpec((tile_m, n_pad),     lambda i: (i, 0)),  # A rows
                pl.BlockSpec((n_pad, f_pad),      lambda i: (0, 0)),  # full X
                pl.BlockSpec((2 * f_pad, h_pad),  lambda i: (0, 0)),  # [W_l;W_r]
                pl.BlockSpec((1, h_pad),          lambda i: (0, 0)),  # bias
            ],
            out_specs=pl.BlockSpec((tile_m, h_pad), lambda i: (i, 0)),
        ),
        compiler_params=pltpu.CompilerParams(
            dimension_semantics=("parallel",),
            vmem_limit_bytes=_vmem_limit_bytes(est),
        ),
    )(adj, x, w_stack, b)


# -----------------------------------------------------------------------------
# Kernel 2: both SAGEConv layers (+ReLUs) fused, for graphs that fit VMEM.
# The layer-1 activations never round-trip to HBM.
# -----------------------------------------------------------------------------
def _sage_fused2_kernel(a_ref, x_ref, w1_ref, b1_ref, w2_ref, b2_ref, o_ref):
    a = a_ref[...]
    x = x_ref[...]
    # layer 1
    agg1 = jnp.dot(a, x, preferred_element_type=jnp.float32)
    z1 = jnp.concatenate([agg1.astype(jnp.bfloat16), x], axis=1)
    h1 = jnp.maximum(
        jnp.dot(z1, w1_ref[...], preferred_element_type=jnp.float32) + b1_ref[...],
        0.0).astype(jnp.bfloat16)
    # layer 2
    agg2 = jnp.dot(a, h1, preferred_element_type=jnp.float32)
    z2 = jnp.concatenate([agg2.astype(jnp.bfloat16), h1], axis=1)
    h2 = jnp.dot(z2, w2_ref[...], preferred_element_type=jnp.float32) + b2_ref[...]
    o_ref[...] = jnp.maximum(h2, 0.0).astype(o_ref.dtype)


def sage_two_layer_fused(adj, x, w1, b1, w2, b2, *, out_dtype=jnp.float32, est=0):
    n_pad, f_pad = x.shape
    h_pad = w1.shape[1]
    full = lambda shape: pl.BlockSpec(shape, lambda i: tuple(0 for _ in shape))
    return pl.pallas_call(
        _sage_fused2_kernel,
        out_shape=jax.ShapeDtypeStruct((n_pad, h_pad), out_dtype),
        grid_spec=pltpu.PrefetchScalarGridSpec(
            num_scalar_prefetch=0,
            grid=(1,),
            in_specs=[
                full((n_pad, n_pad)),
                full((n_pad, f_pad)),
                full((2 * f_pad, h_pad)),
                full((1, h_pad)),
                full((2 * h_pad, h_pad)),
                full((1, h_pad)),
            ],
            out_specs=full((n_pad, h_pad)),
        ),
        compiler_params=pltpu.CompilerParams(
            dimension_semantics=("arbitrary",),
            vmem_limit_bytes=_vmem_limit_bytes(est),
        ),
    )(adj, x, w1, b1, w2, b2)


# -----------------------------------------------------------------------------
# Plain-JAX glue: parameters, adjacency construction, 2-layer forward.
# -----------------------------------------------------------------------------
def xavier_uniform(key, fan_in, fan_out):
    bound = (6.0 / (fan_in + fan_out)) ** 0.5
    # stored as [in, out] so the kernel computes x @ W (== x @ W_torch.T)
    return jax.random.uniform(key, (fan_in, fan_out), jnp.float32,
                              minval=-bound, maxval=bound)


def init_sage_params(key, in_channels, hidden_channels):
    ks = jax.random.split(key, 4)
    params = []
    dims = [(in_channels, hidden_channels), (hidden_channels, hidden_channels)]
    for layer, (fi, fo) in enumerate(dims):
        w_l = xavier_uniform(ks[2 * layer + 0], fi, fo)    # neighbor branch
        w_r = xavier_uniform(ks[2 * layer + 1], fi, fo)    # root branch (no bias)
        b_l = jnp.zeros((fo,), jnp.float32)
        params.append((w_l, w_r, b_l))
    return params


def build_mean_adjacency(edge_index, num_nodes):
    """Dense row-normalized adjacency: A[i, j] = 1/deg_in(i) for edge j->i."""
    src, dst = edge_index[0], edge_index[1]
    a = jnp.zeros((num_nodes, num_nodes), jnp.float32).at[dst, src].add(1.0)
    deg = jnp.maximum(a.sum(axis=1, keepdims=True), 1.0)   # isolated nodes -> 0 agg
    return a / deg


def _prep_layer(w_l, w_r, b, f_pad, h_pad):
    """Stack neighbor/root weights into one lane-padded bf16 matrix."""
    f_in, h = w_l.shape
    w_stack = jnp.zeros((2 * f_pad, h_pad), jnp.bfloat16)
    w_stack = w_stack.at[:f_in, :h].set(w_l.astype(jnp.bfloat16))
    w_stack = w_stack.at[f_pad:f_pad + f_in, :h].set(w_r.astype(jnp.bfloat16))
    b_pad = jnp.zeros((1, h_pad), jnp.float32).at[0, :h].set(b)
    return w_stack, b_pad


@jax.jit
def sage_forward(params, x, edge_index):
    (w_l1, w_r1, b1), (w_l2, w_r2, b2) = params
    n, f_in = x.shape
    h = w_l1.shape[1]

    n_pad = _round_up(n, TILE_M)
    f_pad = _round_up(f_in, LANE)
    h_pad = _round_up(h, LANE)

    adj = build_mean_adjacency(edge_index, n)
    adj_p = _pad2d(adj, n_pad, n_pad).astype(jnp.bfloat16)
    x_p = _pad2d(x, n_pad, f_pad).astype(jnp.bfloat16)

    w1s, b1p = _prep_layer(w_l1, w_r1, b1, f_pad, h_pad)
    w2s, b2p = _prep_layer(w_l2, w_r2, b2, h_pad, h_pad)

    # Rough VMEM footprint of the fully-fused 2-layer kernel.
    fused_est = (n_pad * n_pad * 2
                 + n_pad * f_pad * 10
                 + n_pad * h_pad * 16
                 + 2 * (f_pad + h_pad) * h_pad * 2)

    if fused_est <= (16 << 20):
        out = sage_two_layer_fused(adj_p, x_p, w1s, b1p, w2s, b2p,
                                   out_dtype=jnp.float32, est=fused_est)
    else:
        h1 = sage_conv_relu(adj_p, x_p, w1s, b1p, out_dtype=jnp.bfloat16)
        out = sage_conv_relu(adj_p, h1, w2s, b2p, out_dtype=jnp.float32)

    return out[:n, :h]


# -----------------------------------------------------------------------------
if __name__ == "__main__":
    key = jax.random.PRNGKey(0)
    k_param, k_x, k_src, k_dst = jax.random.split(key, 4)

    num_nodes = 128
    in_channels = 16
    hidden_channels = 32
    num_edges = 512

    params = init_sage_params(k_param, in_channels, hidden_channels)
    x = jax.random.normal(k_x, (num_nodes, in_channels), jnp.float32)
    edge_index = jnp.stack([
        jax.random.randint(k_src, (num_edges,), 0, num_nodes),
        jax.random.randint(k_dst, (num_edges,), 0, num_nodes),
    ], axis=0)  # [2, E], row 0 = source, row 1 = target

    out = sage_forward(params, x, edge_index)
    jax.block_until_ready(out)
    assert out.shape == (num_nodes, hidden_channels)
    assert bool(jnp.all(jnp.isfinite(out)))
    print("KERNEL_OK")
</pallas_src>

<mosaic_0001>
module attributes {stable_mosaic.version = 11 : i64} {
  func.func private @main(%arg0: i32) attributes {dimension_semantics = [#tpu.dimension_semantics<core_parallel>], iteration_bounds = array<i64: 2>, tpu.core_type = #tpu.core_type<sc_scalar_subcore>, window_params = []} {
    return
  }
}

module attributes {stable_mosaic.version = 11 : i64} {
  func.func private @main(%arg0: i32) attributes {dimension_semantics = [#tpu.dimension_semantics<core_parallel>], iteration_bounds = array<i64: 2>, tpu.core_type = #tpu.core_type<sc_scalar_subcore>, window_params = []} {
    return
  }
}

module attributes {stable_mosaic.version = 11 : i64} {
  func.func @_sage_fused2_kernel(%arg0: i32, %arg1: memref<128x128xbf16, #tpu.memory_space<vmem>>, %arg2: memref<128x128xbf16, #tpu.memory_space<vmem>>, %arg3: memref<256x128xbf16, #tpu.memory_space<vmem>>, %arg4: memref<1x128xf32, #tpu.memory_space<vmem>>, %arg5: memref<256x128xbf16, #tpu.memory_space<vmem>>, %arg6: memref<1x128xf32, #tpu.memory_space<vmem>>, %arg7: memref<128x128xf32, #tpu.memory_space<vmem>>) attributes {dimension_semantics = [#tpu.dimension_semantics<arbitrary>], iteration_bounds = array<i64: 1>, scalar_prefetch = 0 : i64, scratch_operands = 0 : i64, tpu.core_type = #tpu.core_type<tc>, window_params = [{pipeline_mode = #tpu.pipeline_mode<synchronous>, transform_indices = @transform_0, window_bounds = array<i64: 128, 128>}, {pipeline_mode = #tpu.pipeline_mode<synchronous>, transform_indices = @transform_1, window_bounds = array<i64: 128, 128>}, {pipeline_mode = #tpu.pipeline_mode<synchronous>, transform_indices = @transform_2, window_bounds = array<i64: 256, 128>}, {pipeline_mode = #tpu.pipeline_mode<synchronous>, transform_indices = @transform_3, window_bounds = array<i64: 1, 128>}, {pipeline_mode = #tpu.pipeline_mode<synchronous>, transform_indices = @transform_4, window_bounds = array<i64: 256, 128>}, {pipeline_mode = #tpu.pipeline_mode<synchronous>, transform_indices = @transform_5, window_bounds = array<i64: 1, 128>}, {pipeline_mode = #tpu.pipeline_mode<synchronous>, transform_indices = @transform_6, window_bounds = array<i64: 128, 128>}]} {
    %c0 = arith.constant 0 : index
    %c0_0 = arith.constant 0 : index
    %0 = vector.load %arg1[%c0, %c0_0] : memref<128x128xbf16, #tpu.memory_space<vmem>>, vector<128x128xbf16>
    %c0_1 = arith.constant 0 : index
    %c0_2 = arith.constant 0 : index
    %1 = vector.load %arg2[%c0_1, %c0_2] : memref<128x128xbf16, #tpu.memory_space<vmem>>, vector<128x128xbf16>
    %cst = arith.constant dense<0.000000e+00> : vector<128x128xf32>
    %2 = tpu.matmul %0, %1, %cst {dimension_numbers = #tpu.dot_dimension_numbers<[1], [0], [0], [1], [0, 0, 1, 1], [], []>} : vector<128x128xbf16>, vector<128x128xbf16>, vector<128x128xf32> -> vector<128x128xf32>
    %3 = arith.truncf %2 : vector<128x128xf32> to vector<128x128xbf16>
    %4 = tpu.concatenate %3, %1 in 1 : vector<128x128xbf16>, vector<128x128xbf16> -> vector<128x256xbf16>
    %c0_3 = arith.constant 0 : index
    %c0_4 = arith.constant 0 : index
    %5 = vector.load %arg3[%c0_3, %c0_4] : memref<256x128xbf16, #tpu.memory_space<vmem>>, vector<256x128xbf16>
    %cst_5 = arith.constant dense<0.000000e+00> : vector<128x128xf32>
    %6 = tpu.matmul %4, %5, %cst_5 {dimension_numbers = #tpu.dot_dimension_numbers<[1], [0], [0], [1], [0, 0, 1, 1], [], []>} : vector<128x256xbf16>, vector<256x128xbf16>, vector<128x128xf32> -> vector<128x128xf32>
    %c0_6 = arith.constant 0 : index
    %c0_7 = arith.constant 0 : index
    %7 = vector.load %arg4[%c0_6, %c0_7] : memref<1x128xf32, #tpu.memory_space<vmem>>, vector<1x128xf32>
    %8 = vector.broadcast %7 : vector<1x128xf32> to vector<128x128xf32>
    %9 = arith.addf %6, %8 : vector<128x128xf32>
    %cst_8 = arith.constant 0.000000e+00 : f32
    %10 = vector.broadcast %cst_8 : f32 to vector<128x128xf32>
    %11 = arith.maximumf %9, %10 : vector<128x128xf32>
    %12 = arith.truncf %11 : vector<128x128xf32> to vector<128x128xbf16>
    %cst_9 = arith.constant dense<0.000000e+00> : vector<128x128xf32>
    %13 = tpu.matmul %0, %12, %cst_9 {dimension_numbers = #tpu.dot_dimension_numbers<[1], [0], [0], [1], [0, 0, 1, 1], [], []>} : vector<128x128xbf16>, vector<128x128xbf16>, vector<128x128xf32> -> vector<128x128xf32>
    %14 = arith.truncf %13 : vector<128x128xf32> to vector<128x128xbf16>
    %15 = tpu.concatenate %14, %12 in 1 : vector<128x128xbf16>, vector<128x128xbf16> -> vector<128x256xbf16>
    %c0_10 = arith.constant 0 : index
    %c0_11 = arith.constant 0 : index
    %16 = vector.load %arg5[%c0_10, %c0_11] : memref<256x128xbf16, #tpu.memory_space<vmem>>, vector<256x128xbf16>
    %cst_12 = arith.constant dense<0.000000e+00> : vector<128x128xf32>
    %17 = tpu.matmul %15, %16, %cst_12 {dimension_numbers = #tpu.dot_dimension_numbers<[1], [0], [0], [1], [0, 0, 1, 1], [], []>} : vector<128x256xbf16>, vector<256x128xbf16>, vector<128x128xf32> -> vector<128x128xf32>
    %c0_13 = arith.constant 0 : index
    %c0_14 = arith.constant 0 : index
    %18 = vector.load %arg6[%c0_13, %c0_14] : memref<1x128xf32, #tpu.memory_space<vmem>>, vector<1x128xf32>
    %19 = vector.broadcast %18 : vector<1x128xf32> to vector<128x128xf32>
    %20 = arith.addf %17, %19 : vector<128x128xf32>
    %cst_15 = arith.constant 0.000000e+00 : f32
    %21 = vector.broadcast %cst_15 : f32 to vector<128x128xf32>
    %22 = arith.maximumf %20, %21 : vector<128x128xf32>
    %c0_16 = arith.constant 0 : index
    %c0_17 = arith.constant 0 : index
    %23 = vector.load %arg7[%c0_16, %c0_17] : memref<128x128xf32, #tpu.memory_space<vmem>>, vector<128x128xf32>
    tpu.vector_store %arg7[%c0_16, %c0_17], %22 {strides = array<i32>} : memref<128x128xf32, #tpu.memory_space<vmem>>, vector<128x128xf32>,
    return
  }
  func.func @transform_0(%arg0: i32) -> (i32, i32) {
    %c0_i32 = arith.constant 0 : i32
    %c0_i32_0 = arith.constant 0 : i32
    %c0_i32_1 = arith.constant 0 : i32
    return %c0_i32, %c0_i32_0 : i32, i32
  }
  func.func @transform_1(%arg0: i32) -> (i32, i32) {
    %c0_i32 = arith.constant 0 : i32
    %c0_i32_0 = arith.constant 0 : i32
    %c0_i32_1 = arith.constant 0 : i32
    return %c0_i32, %c0_i32_0 : i32, i32
  }
  func.func @transform_2(%arg0: i32) -> (i32, i32) {
    %c0_i32 = arith.constant 0 : i32
    %c0_i32_0 = arith.constant 0 : i32
    %c0_i32_1 = arith.constant 0 : i32
    return %c0_i32, %c0_i32_0 : i32, i32
  }
  func.func @transform_3(%arg0: i32) -> (i32, i32) {
    %c0_i32 = arith.constant 0 : i32
    %c0_i32_0 = arith.constant 0 : i32
    %c0_i32_1 = arith.constant 0 : i32
    return %c0_i32, %c0_i32_0 : i32, i32
  }
  func.func @transform_4(%arg0: i32) -> (i32, i32) {
    %c0_i32 = arith.constant 0 : i32
    %c0_i32_0 = arith.constant 0 : i32
    %c0_i32_1 = arith.constant 0 : i32
    return %c0_i32, %c0_i32_0 : i32, i32
  }
  func.func @transform_5(%arg0: i32) -> (i32, i32) {
    %c0_i32 = arith.constant 0 : i32
    %c0_i32_0 = arith.constant 0 : i32
    %c0_i32_1 = arith.constant 0 : i32
    return %c0_i32, %c0_i32_0 : i32, i32
  }
  func.func @transform_6(%arg0: i32) -> (i32, i32) {
    %c0_i32 = arith.constant 0 : i32
    %c0_i32_0 = arith.constant 0 : i32
    %c0_i32_1 = arith.constant 0 : i32
    return %c0_i32, %c0_i32_0 : i32, i32
  }
}

</mosaic_0001>

<llo_original>
// kernel: sage_forward.1
$region0: #{sage_forward.1}
  #allocation0 [shape = 'u32[]', space=smem, size = 0x4, offset = 0x4, fixed_abs, tag = 'smem constant byte address 0x4 - core index']
  #allocation1 [shape = 'u32[144,128]{1,0:T(1,128)}', space=vmem, size = 0x12000, scoped, tag = 'internal scratch']
  %s0 = inlined_call_operand.vmem [shape: bf16[128,128], index: 0, kind: input, shape index: {}]
  %s1 = inlined_call_operand.vmem [shape: bf16[128,128], index: 1, kind: input, shape index: {}]
  %s2 = inlined_call_operand.vmem [shape: bf16[256,128], index: 2, kind: input, shape index: {}]
  %s3 = inlined_call_operand.vmem [shape: f32[1,128], index: 3, kind: input, shape index: {}]
  %s4 = inlined_call_operand.vmem [shape: bf16[256,128], index: 4, kind: input, shape index: {}]
  %s5 = inlined_call_operand.vmem [shape: f32[1,128], index: 5, kind: input, shape index: {}]
  %s6 = inlined_call_operand.vmem [shape: f32[128,128], index: 6, kind: output, shape index: {}]
  %s7 = sld [smem:[#allocation0]]
  $region34: #{sage_forward.1} parent=0
    _
  %s9 = ssub.s32 1, %s7
  %s10 = scalar_select 0, %s9, %s7
  // Predicated region
  $region2: #{sage_forward.1} parent=0 // pred_check
    _
  $region3: #{sage_forward.1} parent=0 // pred_check_branch
    %12 = sbr.rel (0) target = $region5
  $region4: #{sage_forward.1} parent=0 // pred_region
    _
  $region5: #{sage_forward.1} parent=0 // pred_fallthru
    _
  // Predicated region
  $region6: #{sage_forward.1} parent=0 // pred_check
    _
  $region7: #{sage_forward.1} parent=0 // pred_check_branch
    %14 = sbr.rel (0) target = $region9
  $region8: #{sage_forward.1} parent=0 // pred_region
    _
  $region9: #{sage_forward.1} parent=0 // pred_fallthru
    _
  // Predicated region
  $region10: #{sage_forward.1} parent=0 // pred_check
    _
  $region11: #{sage_forward.1} parent=0 // pred_check_branch
    %16 = sbr.rel (0) target = $region13
  $region12: #{sage_forward.1} parent=0 // pred_region
    _
  $region13: #{sage_forward.1} parent=0 // pred_fallthru
    _
  // Predicated region
  $region14: #{sage_forward.1} parent=0 // pred_check
    _
  $region15: #{sage_forward.1} parent=0 // pred_check_branch
    %18 = sbr.rel (0) target = $region17
  $region16: #{sage_forward.1} parent=0 // pred_region
    _
  $region17: #{sage_forward.1} parent=0 // pred_fallthru
    _
  // Predicated region
  $region18: #{sage_forward.1} parent=0 // pred_check
    _
  $region19: #{sage_forward.1} parent=0 // pred_check_branch
    %20 = sbr.rel (0) target = $region21
  $region20: #{sage_forward.1} parent=0 // pred_region
    _
  $region21: #{sage_forward.1} parent=0 // pred_fallthru
    _
  // Predicated region
  $region22: #{sage_forward.1} parent=0 // pred_check
    _
  $region23: #{sage_forward.1} parent=0 // pred_check_branch
    %22 = sbr.rel (0) target = $region25
  $region24: #{sage_forward.1} parent=0 // pred_region
    _
  $region25: #{sage_forward.1} parent=0 // pred_fallthru
    _
  %v24 = vld [vmem:[%s0] sm:$0xf]
  %v25 = vld [vmem:[%s0 + $0x4] sm:$0xf]
  %v26 = vld [vmem:[%s0 + $0x8] sm:$0xf]
  %v27 = vld [vmem:[%s0 + $0xc] sm:$0xf]
  %v28 = vld [vmem:[%s0 + $0x10] sm:$0xf]
  %v29 = vld [vmem:[%s0 + $0x14] sm:$0xf]
  %v30 = vld [vmem:[%s0 + $0x18] sm:$0xf]
  %v31 = vld [vmem:[%s0 + $0x1c] sm:$0xf]
  %v32 = vld [vmem:[%s0 + $0x20] sm:$0xf]
  %v33 = vld [vmem:[%s0 + $0x24] sm:$0xf]
  %v34 = vld [vmem:[%s0 + $0x28] sm:$0xf]
  %v35 = vld [vmem:[%s0 + $0x2c] sm:$0xf]
  %v36 = vld [vmem:[%s0 + $0x30] sm:$0xf]
  %v37 = vld [vmem:[%s0 + $0x34] sm:$0xf]
  %v38 = vld [vmem:[%s0 + $0x38] sm:$0xf]
  %v39 = vld [vmem:[%s0 + $0x3c] sm:$0xf]
  %v40 = vld [vmem:[%s1] sm:$0xf]
  %v41 = vld [vmem:[%s1 + $0x4] sm:$0xf]
  %v42 = vld [vmem:[%s1 + $0x8] sm:$0xf]
  %v43 = vld [vmem:[%s1 + $0xc] sm:$0xf]
  %v44 = vld [vmem:[%s1 + $0x10] sm:$0xf]
  %v45 = vld [vmem:[%s1 + $0x14] sm:$0xf]
  %v46 = vld [vmem:[%s1 + $0x18] sm:$0xf]
  %v47 = vld [vmem:[%s1 + $0x1c] sm:$0xf]
  %v48 = vld [vmem:[%s1 + $0x20] sm:$0xf]
  %v49 = vld [vmem:[%s1 + $0x24] sm:$0xf]
  %v50 = vld [vmem:[%s1 + $0x28] sm:$0xf]
  %v51 = vld [vmem:[%s1 + $0x2c] sm:$0xf]
  %v52 = vld [vmem:[%s1 + $0x30] sm:$0xf]
  %v53 = vld [vmem:[%s1 + $0x34] sm:$0xf]
  %v54 = vld [vmem:[%s1 + $0x38] sm:$0xf]
  %v55 = vld [vmem:[%s1 + $0x3c] sm:$0xf]
  %v72 = vunpack.c.l.b16 %v24
  %v73 = vunpack.c.l.b16 %v25
  %v74 = vunpack.c.l.b16 %v26
  %v75 = vunpack.c.l.b16 %v27
  %v76 = vunpack.c.l.b16 %v28
  %v77 = vunpack.c.l.b16 %v29
  %v78 = vunpack.c.l.b16 %v30
  %v79 = vunpack.c.l.b16 %v31
  %v80 = vunpack.c.l.b16 %v32
  %v81 = vunpack.c.l.b16 %v33
  %v82 = vunpack.c.l.b16 %v34
  %v83 = vunpack.c.l.b16 %v35
  %v84 = vunpack.c.l.b16 %v36
  %v85 = vunpack.c.l.b16 %v37
  %v86 = vunpack.c.l.b16 %v38
  %v87 = vunpack.c.l.b16 %v39
  %v88 = vpack.c.b16 %v73, %v72
  %v89 = vpack.c.b16 %v75, %v74
  %v90 = vpack.c.b16 %v77, %v76
  %v91 = vpack.c.b16 %v79, %v78
  %v92 = vpack.c.b16 %v81, %v80
  %v93 = vpack.c.b16 %v83, %v82
  %v94 = vpack.c.b16 %v85, %v84
  %v95 = vpack.c.b16 %v87, %v86
  %v120 = vunpack.c.l.b16 %v40
  %v121 = vunpack.c.l.b16 %v41
  %v122 = vunpack.c.l.b16 %v42
  %v123 = vunpack.c.l.b16 %v43
  %v124 = vunpack.c.l.b16 %v44
  %v125 = vunpack.c.l.b16 %v45
  %v126 = vunpack.c.l.b16 %v46
  %v127 = vunpack.c.l.b16 %v47
  %v128 = vunpack.c.l.b16 %v48
  %v129 = vunpack.c.l.b16 %v49
  %v130 = vunpack.c.l.b16 %v50
  %v131 = vunpack.c.l.b16 %v51
  %v132 = vunpack.c.l.b16 %v52
  %v133 = vunpack.c.l.b16 %v53
  %v134 = vunpack.c.l.b16 %v54
  %v135 = vunpack.c.l.b16 %v55
  %v136 = vpack.c.b16 %v121, %v120
  %v137 = vpack.c.b16 %v123, %v122
  %v138 = vpack.c.b16 %v125, %v124
  %v139 = vpack.c.b16 %v127, %v126
  %v140 = vpack.c.b16 %v129, %v128
  %v141 = vpack.c.b16 %v131, %v130
  %v142 = vpack.c.b16 %v133, %v132
  %v143 = vpack.c.b16 %v135, %v134
  %152 = vmatprep.subr.bf16.mxu0 0
  %153 = vmatpush1.bf16.msra.mxu0 %v136
  %154 = vmatprep.subr.bf16.mxu0 0
  %155 = vmatpush1.bf16.msra.mxu0 %v137
  %156 = vmatprep.subr.bf16.mxu0 0
  %157 = vmatpush1.bf16.msra.mxu0 %v138
  %158 = vmatprep.subr.bf16.mxu0 0
  %159 = vmatpush1.bf16.msra.mxu0 %v139
  %160 = vmatprep.subr.bf16.mxu0 0
  %161 = vmatpush1.bf16.msra.mxu0 %v140
  %162 = vmatprep.subr.bf16.mxu0 0
  %163 = vmatpush1.bf16.msra.mxu0 %v141
  %164 = vmatprep.subr.bf16.mxu0 0
  %165 = vmatpush1.bf16.msra.mxu0 %v142
  %166 = vmatprep.subr.bf16.mxu0 0
  %167 = vmatpush1.bf16.msra.mxu0 %v143
  %168 = vmatprep.subr.bf16.mxu0 0
  %169 = vmatpush1.bf16.msra.mxu0 0
  %170 = vmatprep.subr.bf16.mxu0 0
  %171 = vmatpush1.bf16.msra.mxu0 0
  %172 = vmatprep.subr.bf16.mxu0 0
  %173 = vmatpush1.bf16.msra.mxu0 0
  %174 = vmatprep.subr.bf16.mxu0 0
  %175 = vmatpush1.bf16.msra.mxu0 0
  %176 = vmatprep.subr.bf16.mxu0 0
  %177 = vmatpush1.bf16.msra.mxu0 0
  %178 = vmatprep.subr.bf16.mxu0 0
  %179 = vmatpush1.bf16.msra.mxu0 0
  %180 = vmatprep.subr.bf16.mxu0 0
  %181 = vmatpush1.bf16.msra.mxu0 0
  %182 = vmatprep.subr.bf16.mxu0 0
  %183 = vmatpush1.bf16.msra.mxu0 0
  %184 = vmatprep.mubr.bf16.mxu0 0
  %185 = vmatmul.mubr.bf16.gmra.mrb[0].mxu0 %v88
  %v186 = vpop.f32.mrb[0].mxu0
  %v187 = vadd.f32 0.0, %v186
  %v188 = vpop.f32.mrb[0].mxu0
  %v189 = vpop.f32.mrb[0].mxu0
  %v190 = vadd.f32 0.0, %v189
  %v191 = vpop.f32.mrb[0].mxu0
  %192 = vmatprep.mubr.bf16.mxu0 0
  %193 = vmatmul.mubr.bf16.gmra.mrb[0].mxu0 %v89
  %v194 = vpop.f32.mrb[0].mxu0
  %v195 = vadd.f32 0.0, %v194
  %v196 = vpop.f32.mrb[0].mxu0
  %v197 = vpop.f32.mrb[0].mxu0
  %v198 = vadd.f32 0.0, %v197
  %v199 = vpop.f32.mrb[0].mxu0
  %200 = vmatprep.mubr.bf16.mxu0 0
  %201 = vmatmul.mubr.bf16.gmra.mrb[0].mxu0 %v90
  %v202 = vpop.f32.mrb[0].mxu0
  %v203 = vadd.f32 0.0, %v202
  %v204 = vpop.f32.mrb[0].mxu0
  %v205 = vpop.f32.mrb[0].mxu0
  %v206 = vadd.f32 0.0, %v205
  %v207 = vpop.f32.mrb[0].mxu0
  %208 = vmatprep.mubr.bf16.mxu0 0
  %209 = vmatmul.mubr.bf16.gmra.mrb[0].mxu0 %v91
  %v210 = vpop.f32.mrb[0].mxu0
  %v211 = vadd.f32 0.0, %v210
  %v212 = vpop.f32.mrb[0].mxu0
  %v213 = vpop.f32.mrb[0].mxu0
  %v214 = vadd.f32 0.0, %v213
  %v215 = vpop.f32.mrb[0].mxu0
  %216 = vmatprep.mubr.bf16.mxu0 0
  %217 = vmatmul.mubr.bf16.gmra.mrb[0].mxu0 %v92
  %v218 = vpop.f32.mrb[0].mxu0
  %v219 = vadd.f32 0.0, %v218
  %v220 = vpop.f32.mrb[0].mxu0
  %v221 = vpop.f32.mrb[0].mxu0
  %v222 = vadd.f32 0.0, %v221
  %v223 = vpop.f32.mrb[0].mxu0
  %224 = vmatprep.mubr.bf16.mxu0 0
  %225 = vmatmul.mubr.bf16.gmra.mrb[0].mxu0 %v93
  %v226 = vpop.f32.mrb[0].mxu0
  %v227 = vadd.f32 0.0, %v226
  %v228 = vpop.f32.mrb[0].mxu0
  %v229 = vpop.f32.mrb[0].mxu0
  %v230 = vadd.f32 0.0, %v229
  %v231 = vpop.f32.mrb[0].mxu0
  %232 = vmatprep.mubr.bf16.mxu0 0
  %233 = vmatmul.mubr.bf16.gmra.mrb[0].mxu0 %v94
  %v234 = vpop.f32.mrb[0].mxu0
  %v235 = vadd.f32 0.0, %v234
  %v236 = vpop.f32.mrb[0].mxu0
  %v237 = vpop.f32.mrb[0].mxu0
  %v238 = vadd.f32 0.0, %v237
  %v239 = vpop.f32.mrb[0].mxu0
  %240 = vmatprep.mubr.bf16.mxu0 0
  %241 = vmatmul.mubr.bf16.gmra.mrb[0].mxu0 %v95
  %v242 = vpop.f32.mrb[0].mxu0
  %v243 = vadd.f32 0.0, %v242
  %v244 = vpop.f32.mrb[0].mxu0
  %v245 = vpop.f32.mrb[0].mxu0
  %v246 = vadd.f32 0.0, %v245
  %v247 = vpop.f32.mrb[0].mxu0
  %248 = vdwg.mxu0
  %v249 = vpack.c.bf16 %v190, %v187
  %v250 = vpack.c.bf16 %v198, %v195
  %v251 = vpack.c.bf16 %v206, %v203
  %v252 = vpack.c.bf16 %v214, %v211
  %v253 = vpack.c.bf16 %v222, %v219
  %v254 = vpack.c.bf16 %v230, %v227
  %v255 = vpack.c.bf16 %v238, %v235
  %v256 = vpack.c.bf16 %v246, %v243
  %v257 = vld [vmem:[%s2] sm:$0xf]
  %v258 = vld [vmem:[%s2 + $0x4] sm:$0xf]
  %v259 = vld [vmem:[%s2 + $0x8] sm:$0xf]
  %v260 = vld [vmem:[%s2 + $0xc] sm:$0xf]
  %v261 = vld [vmem:[%s2 + $0x10] sm:$0xf]
  %v262 = vld [vmem:[%s2 + $0x14] sm:$0xf]
  %v263 = vld [vmem:[%s2 + $0x18] sm:$0xf]
  %v264 = vld [vmem:[%s2 + $0x1c] sm:$0xf]
  %v265 = vld [vmem:[%s2 + $0x20] sm:$0xf]
  %v266 = vld [vmem:[%s2 + $0x24] sm:$0xf]
  %v267 = vld [vmem:[%s2 + $0x28] sm:$0xf]
  %v268 = vld [vmem:[%s2 + $0x2c] sm:$0xf]
  %v269 = vld [vmem:[%s2 + $0x30] sm:$0xf]
  %v270 = vld [vmem:[%s2 + $0x34] sm:$0xf]
  %v271 = vld [vmem:[%s2 + $0x38] sm:$0xf]
  %v272 = vld [vmem:[%s2 + $0x3c] sm:$0xf]
  %v273 = vld [vmem:[%s2 + $0x40] sm:$0xf]
  %v274 = vld [vmem:[%s2 + $0x44] sm:$0xf]
  %v275 = vld [vmem:[%s2 + $0x48] sm:$0xf]
  %v276 = vld [vmem:[%s2 + $0x4c] sm:$0xf]
  %v277 = vld [vmem:[%s2 + $0x50] sm:$0xf]
  %v278 = vld [vmem:[%s2 + $0x54] sm:$0xf]
  %v279 = vld [vmem:[%s2 + $0x58] sm:$0xf]
  %v280 = vld [vmem:[%s2 + $0x5c] sm:$0xf]
  %v281 = vld [vmem:[%s2 + $0x60] sm:$0xf]
  %v282 = vld [vmem:[%s2 + $0x64] sm:$0xf]
  %v283 = vld [vmem:[%s2 + $0x68] sm:$0xf]
  %v284 = vld [vmem:[%s2 + $0x6c] sm:$0xf]
  %v285 = vld [vmem:[%s2 + $0x70] sm:$0xf]
  %v286 = vld [vmem:[%s2 + $0x74] sm:$0xf]
  %v287 = vld [vmem:[%s2 + $0x78] sm:$0xf]
  %v288 = vld [vmem:[%s2 + $0x7c] sm:$0xf]
  %v289 = vld [vmem:[%s3] sm:$0x1]
  %v291 = vlaneseq
  %v292 = vshrl.u32 %v291, 7
  %v293 = vsub.s32 0, %v292
  %v294 = vrot.slane %v289, %v293
  %v328 = vunpack.c.l.b16 %v257
  %v329 = vunpack.c.l.b16 %v258
  %v330 = vunpack.c.l.b16 %v259
  %v331 = vunpack.c.l.b16 %v260
  %v332 = vunpack.c.l.b16 %v261
  %v333 = vunpack.c.l.b16 %v262
  %v334 = vunpack.c.l.b16 %v263
  %v335 = vunpack.c.l.b16 %v264
  %v336 = vunpack.c.l.b16 %v265
  %v337 = vunpack.c.l.b16 %v266
  %v338 = vunpack.c.l.b16 %v267
  %v339 = vunpack.c.l.b16 %v268
  %v340 = vunpack.c.l.b16 %v269
  %v341 = vunpack.c.l.b16 %v270
  %v342 = vunpack.c.l.b16 %v271
  %v343 = vunpack.c.l.b16 %v272
  %v344 = vunpack.c.l.b16 %v273
  %v345 = vunpack.c.l.b16 %v274
  %v346 = vunpack.c.l.b16 %v275
  %v347 = vunpack.c.l.b16 %v276
  %v348 = vunpack.c.l.b16 %v277
  %v349 = vunpack.c.l.b16 %v278
  %v350 = vunpack.c.l.b16 %v279
  %v351 = vunpack.c.l.b16 %v280
  %v352 = vunpack.c.l.b16 %v281
  %v353 = vunpack.c.l.b16 %v282
  %v354 = vunpack.c.l.b16 %v283
  %v355 = vunpack.c.l.b16 %v284
  %v356 = vunpack.c.l.b16 %v285
  %v357 = vunpack.c.l.b16 %v286
  %v358 = vunpack.c.l.b16 %v287
  %v359 = vunpack.c.l.b16 %v288
  %v360 = vpack.c.b16 %v329, %v328
  %v361 = vpack.c.b16 %v331, %v330
  %v362 = vpack.c.b16 %v333, %v332
  %v363 = vpack.c.b16 %v335, %v334
  %v364 = vpack.c.b16 %v337, %v336
  %v365 = vpack.c.b16 %v339, %v338
  %v366 = vpack.c.b16 %v341, %v340
  %v367 = vpack.c.b16 %v343, %v342
  %v368 = vpack.c.b16 %v345, %v344
  %v369 = vpack.c.b16 %v347, %v346
  %v370 = vpack.c.b16 %v349, %v348
  %v371 = vpack.c.b16 %v351, %v350
  %v372 = vpack.c.b16 %v353, %v352
  %v373 = vpack.c.b16 %v355, %v354
  %v374 = vpack.c.b16 %v357, %v356
  %v375 = vpack.c.b16 %v359, %v358
  %392 = vmatprep.subr.bf16.mxu0 0
  %393 = vmatpush1.bf16.msra.mxu0 %v360
  %394 = vmatprep.subr.bf16.mxu0 0
  %395 = vmatpush1.bf16.msra.mxu0 %v361
  %396 = vmatprep.subr.bf16.mxu0 0
  %397 = vmatpush1.bf16.msra.mxu0 %v362
  %398 = vmatprep.subr.bf16.mxu0 0
  %399 = vmatpush1.bf16.msra.mxu0 %v363
  %400 = vmatprep.subr.bf16.mxu0 0
  %401 = vmatpush1.bf16.msra.mxu0 %v364
  %402 = vmatprep.subr.bf16.mxu0 0
  %403 = vmatpush1.bf16.msra.mxu0 %v365
  %404 = vmatprep.subr.bf16.mxu0 0
  %405 = vmatpush1.bf16.msra.mxu0 %v366
  %406 = vmatprep.subr.bf16.mxu0 0
  %407 = vmatpush1.bf16.msra.mxu0 %v367
  %408 = vmatprep.subr.bf16.mxu0 0
  %409 = vmatpush1.bf16.msra.mxu0 %v368
  %410 = vmatprep.subr.bf16.mxu0 0
  %411 = vmatpush1.bf16.msra.mxu0 %v369
  %412 = vmatprep.subr.bf16.mxu0 0
  %413 = vmatpush1.bf16.msra.mxu0 %v370
  %414 = vmatprep.subr.bf16.mxu0 0
  %415 = vmatpush1.bf16.msra.mxu0 %v371
  %416 = vmatprep.subr.bf16.mxu0 0
  %417 = vmatpush1.bf16.msra.mxu0 %v372
  %418 = vmatprep.subr.bf16.mxu0 0
  %419 = vmatpush1.bf16.msra.mxu0 %v373
  %420 = vmatprep.subr.bf16.mxu0 0
  %421 = vmatpush1.bf16.msra.mxu0 %v374
  %422 = vmatprep.subr.bf16.mxu0 0
  %423 = vmatpush1.bf16.msra.mxu0 %v375
  %424 = vmatprep.mubr.bf16.mxu0 %v136
  %425 = vmatmul.mubr.bf16.gmra.mrb[0].mxu0 %v249
  %v426 = vpop.f32.mrb[0].mxu0
  %v427 = vadd.f32 %v294, %v426
  %v428 = vpop.f32.mrb[0].mxu0
  %v429 = vpop.f32.mrb[0].mxu0
  %v430 = vadd.f32 %v294, %v429
  %v431 = vpop.f32.mrb[0].mxu0
  %432 = vmatprep.mubr.bf16.mxu0 %v137
  %433 = vmatmul.mubr.bf16.gmra.mrb[0].mxu0 %v250
  %v434 = vpop.f32.mrb[0].mxu0
  %v435 = vadd.f32 %v294, %v434
  %v436 = vpop.f32.mrb[0].mxu0
  %v437 = vpop.f32.mrb[0].mxu0
  %v438 = vadd.f32 %v294, %v437
  %v439 = vpop.f32.mrb[0].mxu0
  %440 = vmatprep.mubr.bf16.mxu0 %v138
  %441 = vmatmul.mubr.bf16.gmra.mrb[0].mxu0 %v251
  %v442 = vpop.f32.mrb[0].mxu0
  %v443 = vadd.f32 %v294, %v442
  %v444 = vpop.f32.mrb[0].mxu0
  %v445 = vpop.f32.mrb[0].mxu0
  %v446 = vadd.f32 %v294, %v445
  %v447 = vpop.f32.mrb[0].mxu0
  %448 = vmatprep.mubr.bf16.mxu0 %v139
  %449 = vmatmul.mubr.bf16.gmra.mrb[0].mxu0 %v252
  %v450 = vpop.f32.mrb[0].mxu0
  %v451 = vadd.f32 %v294, %v450
  %v452 = vpop.f32.mrb[0].mxu0
  %v453 = vpop.f32.mrb[0].mxu0
  %v454 = vadd.f32 %v294, %v453
  %v455 = vpop.f32.mrb[0].mxu0
  %456 = vmatprep.mubr.bf16.mxu0 %v140
  %457 = vmatmul.mubr.bf16.gmra.mrb[0].mxu0 %v253
  %v458 = vpop.f32.mrb[0].mxu0
  %v459 = vadd.f32 %v294, %v458
  %v460 = vpop.f32.mrb[0].mxu0
  %v461 = vpop.f32.mrb[0].mxu0
  %v462 = vadd.f32 %v294, %v461
  %v463 = vpop.f32.mrb[0].mxu0
  %464 = vmatprep.mubr.bf16.mxu0 %v141
  %465 = vmatmul.mubr.bf16.gmra.mrb[0].mxu0 %v254
  %v466 = vpop.f32.mrb[0].mxu0
  %v467 = vadd.f32 %v294, %v466
  %v468 = vpop.f32.mrb[0].mxu0
  %v469 = vpop.f32.mrb[0].mxu0
  %v470 = vadd.f32 %v294, %v469
  %v471 = vpop.f32.mrb[0].mxu0
  %472 = vmatprep.mubr.bf16.mxu0 %v142
  %473 = vmatmul.mubr.bf16.gmra.mrb[0].mxu0 %v255
  %v474 = vpop.f32.mrb[0].mxu0
  %v475 = vadd.f32 %v294, %v474
  %v476 = vpop.f32.mrb[0].mxu0
  %v477 = vpop.f32.mrb[0].mxu0
  %v478 = vadd.f32 %v294, %v477
  %v479 = vpop.f32.mrb[0].mxu0
  %480 = vmatprep.mubr.bf16.mxu0 %v143
  %481 = vmatmul.mubr.bf16.gmra.mrb[0].mxu0 %v256
  %v482 = vpop.f32.mrb[0].mxu0
  %v483 = vadd.f32 %v294, %v482
  %v484 = vpop.f32.mrb[0].mxu0
  %v485 = vpop.f32.mrb[0].mxu0
  %v486 = vadd.f32 %v294, %v485
  %v487 = vpop.f32.mrb[0].mxu0
  %488 = vdwg.mxu0
  %v489 = vmax.f32 %v427, 0.0
  %v490 = vmax.f32 %v430, 0.0
  %v491 = vmax.f32 %v435, 0.0
  %v492 = vmax.f32 %v438, 0.0
  %v493 = vmax.f32 %v443, 0.0
  %v494 = vmax.f32 %v446, 0.0
  %v495 = vmax.f32 %v451, 0.0
  %v496 = vmax.f32 %v454, 0.0
  %v497 = vmax.f32 %v459, 0.0
  %v498 = vmax.f32 %v462, 0.0
  %v499 = vmax.f32 %v467, 0.0
  %v500 = vmax.f32 %v470, 0.0
  %v501 = vmax.f32 %v475, 0.0
  %v502 = vmax.f32 %v478, 0.0
  %v503 = vmax.f32 %v483, 0.0
  %v504 = vmax.f32 %v486, 0.0
  %v505 = vpack.c.bf16 %v490, %v489
  %v506 = vpack.c.bf16 %v492, %v491
  %v507 = vpack.c.bf16 %v494, %v493
  %v508 = vpack.c.bf16 %v496, %v495
  %v509 = vpack.c.bf16 %v498, %v497
  %v510 = vpack.c.bf16 %v500, %v499
  %v511 = vpack.c.bf16 %v502, %v501
  %v512 = vpack.c.bf16 %v504, %v503
  %513 = vmatprep.subr.bf16.mxu0 0
  %514 = vmatpush1.bf16.msra.mxu0 %v505
  %515 = vmatprep.subr.bf16.mxu0 0
  %516 = vmatpush1.bf16.msra.mxu0 %v506
  %517 = vmatprep.subr.bf16.mxu0 0
  %518 = vmatpush1.bf16.msra.mxu0 %v507
  %519 = vmatprep.subr.bf16.mxu0 0
  %520 = vmatpush1.bf16.msra.mxu0 %v508
  %521 = vmatprep.subr.bf16.mxu0 0
  %522 = vmatpush1.bf16.msra.mxu0 %v509
  %523 = vmatprep.subr.bf16.mxu0 0
  %524 = vmatpush1.bf16.msra.mxu0 %v510
  %525 = vmatprep.subr.bf16.mxu0 0
  %526 = vmatpush1.bf16.msra.mxu0 %v511
  %527 = vmatprep.subr.bf16.mxu0 0
  %528 = vmatpush1.bf16.msra.mxu0 %v512
  %529 = vmatprep.subr.bf16.mxu0 0
  %530 = vmatpush1.bf16.msra.mxu0 0
  %531 = vmatprep.subr.bf16.mxu0 0
  %532 = vmatpush1.bf16.msra.mxu0 0
  %533 = vmatprep.subr.bf16.mxu0 0
  %534 = vmatpush1.bf16.msra.mxu0 0
  %535 = vmatprep.subr.bf16.mxu0 0
  %536 = vmatpush1.bf16.msra.mxu0 0
  %537 = vmatprep.subr.bf16.mxu0 0
  %538 = vmatpush1.bf16.msra.mxu0 0
  %539 = vmatprep.subr.bf16.mxu0 0
  %540 = vmatpush1.bf16.msra.mxu0 0
  %541 = vmatprep.subr.bf16.mxu0 0
  %542 = vmatpush1.bf16.msra.mxu0 0
  %543 = vmatprep.subr.bf16.mxu0 0
  %544 = vmatpush1.bf16.msra.mxu0 0
  %545 = vmatprep.mubr.bf16.mxu0 0
  %546 = vmatmul.mubr.bf16.gmra.mrb[0].mxu0 %v88
  %v547 = vpop.f32.mrb[0].mxu0
  %v548 = vadd.f32 0.0, %v547
  %v549 = vpop.f32.mrb[0].mxu0
  %v550 = vpop.f32.mrb[0].mxu0
  %v551 = vadd.f32 0.0, %v550
  %v552 = vpop.f32.mrb[0].mxu0
  %553 = vmatprep.mubr.bf16.mxu0 0
  %554 = vmatmul.mubr.bf16.gmra.mrb[0].mxu0 %v89
  %v555 = vpop.f32.mrb[0].mxu0
  %v556 = vadd.f32 0.0, %v555
  %v557 = vpop.f32.mrb[0].mxu0
  %v558 = vpop.f32.mrb[0].mxu0
  %v559 = vadd.f32 0.0, %v558
  %v560 = vpop.f32.mrb[0].mxu0
  %561 = vmatprep.mubr.bf16.mxu0 0
  %562 = vmatmul.mubr.bf16.gmra.mrb[0].mxu0 %v90
  %v563 = vpop.f32.mrb[0].mxu0
  %v564 = vadd.f32 0.0, %v563
  %v565 = vpop.f32.mrb[0].mxu0
  %v566 = vpop.f32.mrb[0].mxu0
  %v567 = vadd.f32 0.0, %v566
  %v568 = vpop.f32.mrb[0].mxu0
  %569 = vmatprep.mubr.bf16.mxu0 0
  %570 = vmatmul.mubr.bf16.gmra.mrb[0].mxu0 %v91
  %v571 = vpop.f32.mrb[0].mxu0
  %v572 = vadd.f32 0.0, %v571
  %v573 = vpop.f32.mrb[0].mxu0
  %v574 = vpop.f32.mrb[0].mxu0
  %v575 = vadd.f32 0.0, %v574
  %v576 = vpop.f32.mrb[0].mxu0
  %577 = vmatprep.mubr.bf16.mxu0 0
  %578 = vmatmul.mubr.bf16.gmra.mrb[0].mxu0 %v92
  %v579 = vpop.f32.mrb[0].mxu0
  %v580 = vadd.f32 0.0, %v579
  %v581 = vpop.f32.mrb[0].mxu0
  %v582 = vpop.f32.mrb[0].mxu0
  %v583 = vadd.f32 0.0, %v582
  %v584 = vpop.f32.mrb[0].mxu0
  %585 = vmatprep.mubr.bf16.mxu0 0
  %586 = vmatmul.mubr.bf16.gmra.mrb[0].mxu0 %v93
  %v587 = vpop.f32.mrb[0].mxu0
  %v588 = vadd.f32 0.0, %v587
  %v589 = vpop.f32.mrb[0].mxu0
  %v590 = vpop.f32.mrb[0].mxu0
  %v591 = vadd.f32 0.0, %v590
  %v592 = vpop.f32.mrb[0].mxu0
  %593 = vmatprep.mubr.bf16.mxu0 0
  %594 = vmatmul.mubr.bf16.gmra.mrb[0].mxu0 %v94
  %v595 = vpop.f32.mrb[0].mxu0
  %v596 = vadd.f32 0.0, %v595
  %v597 = vpop.f32.mrb[0].mxu0
  %v598 = vpop.f32.mrb[0].mxu0
  %v599 = vadd.f32 0.0, %v598
  %v600 = vpop.f32.mrb[0].mxu0
  %601 = vmatprep.mubr.bf16.mxu0 0
  %602 = vmatmul.mubr.bf16.gmra.mrb[0].mxu0 %v95
  %v603 = vpop.f32.mrb[0].mxu0
  %v604 = vadd.f32 0.0, %v603
  %v605 = vpop.f32.mrb[0].mxu0
  %v606 = vpop.f32.mrb[0].mxu0
  %v607 = vadd.f32 0.0, %v606
  %v608 = vpop.f32.mrb[0].mxu0
  %609 = vdwg.mxu0
  %v610 = vpack.c.bf16 %v551, %v548
  %v611 = vpack.c.bf16 %v559, %v556
  %v612 = vpack.c.bf16 %v567, %v564
  %v613 = vpack.c.bf16 %v575, %v572
  %v614 = vpack.c.bf16 %v583, %v580
  %v615 = vpack.c.bf16 %v591, %v588
  %v616 = vpack.c.bf16 %v599, %v596
  %v617 = vpack.c.bf16 %v607, %v604
  %v618 = vld [vmem:[%s4] sm:$0xf]
  %v619 = vld [vmem:[%s4 + $0x4] sm:$0xf]
  %v620 = vld [vmem:[%s4 + $0x8] sm:$0xf]
  %v621 = vld [vmem:[%s4 + $0xc] sm:$0xf]
  %v622 = vld [vmem:[%s4 + $0x10] sm:$0xf]
  %v623 = vld [vmem:[%s4 + $0x14] sm:$0xf]
  %v624 = vld [vmem:[%s4 + $0x18] sm:$0xf]
  %v625 = vld [vmem:[%s4 + $0x1c] sm:$0xf]
  %v626 = vld [vmem:[%s4 + $0x20] sm:$0xf]
  %v627 = vld [vmem:[%s4 + $0x24] sm:$0xf]
  %v628 = vld [vmem:[%s4 + $0x28] sm:$0xf]
  %v629 = vld [vmem:[%s4 + $0x2c] sm:$0xf]
  %v630 = vld [vmem:[%s4 + $0x30] sm:$0xf]
  %v631 = vld [vmem:[%s4 + $0x34] sm:$0xf]
  %v632 = vld [vmem:[%s4 + $0x38] sm:$0xf]
  %v633 = vld [vmem:[%s4 + $0x3c] sm:$0xf]
  %v634 = vld [vmem:[%s4 + $0x40] sm:$0xf]
  %v635 = vld [vmem:[%s4 + $0x44] sm:$0xf]
  %v636 = vld [vmem:[%s4 + $0x48] sm:$0xf]
  %v637 = vld [vmem:[%s4 + $0x4c] sm:$0xf]
  %v638 = vld [vmem:[%s4 + $0x50] sm:$0xf]
  %v639 = vld [vmem:[%s4 + $0x54] sm:$0xf]
  %v640 = vld [vmem:[%s4 + $0x58] sm:$0xf]
  %v641 = vld [vmem:[%s4 + $0x5c] sm:$0xf]
  %v642 = vld [vmem:[%s4 + $0x60] sm:$0xf]
  %v643 = vld [vmem:[%s4 + $0x64] sm:$0xf]
  %v644 = vld [vmem:[%s4 + $0x68] sm:$0xf]
  %v645 = vld [vmem:[%s4 + $0x6c] sm:$0xf]
  %v646 = vld [vmem:[%s4 + $0x70] sm:$0xf]
  %v647 = vld [vmem:[%s4 + $0x74] sm:$0xf]
  %v648 = vld [vmem:[%s4 + $0x78] sm:$0xf]
  %v649 = vld [vmem:[%s4 + $0x7c] sm:$0xf]
  %v650 = vld [vmem:[%s5] sm:$0x1]
  %v652 = vlaneseq
  %v653 = vshrl.u32 %v652, 7
  %v654 = vsub.s32 0, %v653
  %v655 = vrot.slane %v650, %v654
  %v689 = vunpack.c.l.b16 %v618
  %v690 = vunpack.c.l.b16 %v619
  %v691 = vunpack.c.l.b16 %v620
  %v692 = vunpack.c.l.b16 %v621
  %v693 = vunpack.c.l.b16 %v622
  %v694 = vunpack.c.l.b16 %v623
  %v695 = vunpack.c.l.b16 %v624
  %v696 = vunpack.c.l.b16 %v625
  %v697 = vunpack.c.l.b16 %v626
  %v698 = vunpack.c.l.b16 %v627
  %v699 = vunpack.c.l.b16 %v628
  %v700 = vunpack.c.l.b16 %v629
  %v701 = vunpack.c.l.b16 %v630
  %v702 = vunpack.c.l.b16 %v631
  %v703 = vunpack.c.l.b16 %v632
  %v704 = vunpack.c.l.b16 %v633
  %v705 = vunpack.c.l.b16 %v634
  %v706 = vunpack.c.l.b16 %v635
  %v707 = vunpack.c.l.b16 %v636
  %v708 = vunpack.c.l.b16 %v637
  %v709 = vunpack.c.l.b16 %v638
  %v710 = vunpack.c.l.b16 %v639
  %v711 = vunpack.c.l.b16 %v640
  %v712 = vunpack.c.l.b16 %v641
  %v713 = vunpack.c.l.b16 %v642
  %v714 = vunpack.c.l.b16 %v643
  %v715 = vunpack.c.l.b16 %v644
  %v716 = vunpack.c.l.b16 %v645
  %v717 = vunpack.c.l.b16 %v646
  %v718 = vunpack.c.l.b16 %v647
  %v719 = vunpack.c.l.b16 %v648
  %v720 = vunpack.c.l.b16 %v649
  %v721 = vpack.c.b16 %v690, %v689
  %v722 = vpack.c.b16 %v692, %v691
  %v723 = vpack.c.b16 %v694, %v693
  %v724 = vpack.c.b16 %v696, %v695
  %v725 = vpack.c.b16 %v698, %v697
  %v726 = vpack.c.b16 %v700, %v699
  %v727 = vpack.c.b16 %v702, %v701
  %v728 = vpack.c.b16 %v704, %v703
  %v729 = vpack.c.b16 %v706, %v705
  %v730 = vpack.c.b16 %v708, %v707
  %v731 = vpack.c.b16 %v710, %v709
  %v732 = vpack.c.b16 %v712, %v711
  %v733 = vpack.c.b16 %v714, %v713
  %v734 = vpack.c.b16 %v716, %v715
  %v735 = vpack.c.b16 %v718, %v717
  %v736 = vpack.c.b16 %v720, %v719
  %753 = vmatprep.subr.bf16.mxu0 0
  %754 = vmatpush1.bf16.msra.mxu0 %v721
  %755 = vmatprep.subr.bf16.mxu0 0
  %756 = vmatpush1.bf16.msra.mxu0 %v722
  %757 = vmatprep.subr.bf16.mxu0 0
  %758 = vmatpush1.bf16.msra.mxu0 %v723
  %759 = vmatprep.subr.bf16.mxu0 0
  %760 = vmatpush1.bf16.msra.mxu0 %v724
  %761 = vmatprep.subr.bf16.mxu0 0
  %762 = vmatpush1.bf16.msra.mxu0 %v725
  %763 = vmatprep.subr.bf16.mxu0 0
  %764 = vmatpush1.bf16.msra.mxu0 %v726
  %765 = vmatprep.subr.bf16.mxu0 0
  %766 = vmatpush1.bf16.msra.mxu0 %v727
  %767 = vmatprep.subr.bf16.mxu0 0
  %768 = vmatpush1.bf16.msra.mxu0 %v728
  %769 = vmatprep.subr.bf16.mxu0 0
  %770 = vmatpush1.bf16.msra.mxu0 %v729
  %771 = vmatprep.subr.bf16.mxu0 0
  %772 = vmatpush1.bf16.msra.mxu0 %v730
  %773 = vmatprep.subr.bf16.mxu0 0
  %774 = vmatpush1.bf16.msra.mxu0 %v731
  %775 = vmatprep.subr.bf16.mxu0 0
  %776 = vmatpush1.bf16.msra.mxu0 %v732
  %777 = vmatprep.subr.bf16.mxu0 0
  %778 = vmatpush1.bf16.msra.mxu0 %v733
  %779 = vmatprep.subr.bf16.mxu0 0
  %780 = vmatpush1.bf16.msra.mxu0 %v734
  %781 = vmatprep.subr.bf16.mxu0 0
  %782 = vmatpush1.bf16.msra.mxu0 %v735
  %783 = vmatprep.subr.bf16.mxu0 0
  %784 = vmatpush1.bf16.msra.mxu0 %v736
  %785 = vmatprep.mubr.bf16.mxu0 %v505
  %786 = vmatmul.mubr.bf16.gmra.mrb[0].mxu0 %v610
  %v787 = vpop.f32.mrb[0].mxu0
  %v788 = vadd.f32 %v655, %v787
  %v789 = vpop.f32.mrb[0].mxu0
  %v790 = vpop.f32.mrb[0].mxu0
  %v791 = vadd.f32 %v655, %v790
  %v792 = vpop.f32.mrb[0].mxu0
  %793 = vmatprep.mubr.bf16.mxu0 %v506
  %794 = vmatmul.mubr.bf16.gmra.mrb[0].mxu0 %v611
  %v795 = vpop.f32.mrb[0].mxu0
  %v796 = vadd.f32 %v655, %v795
  %v797 = vpop.f32.mrb[0].mxu0
  %v798 = vpop.f32.mrb[0].mxu0
  %v799 = vadd.f32 %v655, %v798
  %v800 = vpop.f32.mrb[0].mxu0
  %801 = vmatprep.mubr.bf16.mxu0 %v507
  %802 = vmatmul.mubr.bf16.gmra.mrb[0].mxu0 %v612
  %v803 = vpop.f32.mrb[0].mxu0
  %v804 = vadd.f32 %v655, %v803
  %v805 = vpop.f32.mrb[0].mxu0
  %v806 = vpop.f32.mrb[0].mxu0
  %v807 = vadd.f32 %v655, %v806
  %v808 = vpop.f32.mrb[0].mxu0
  %809 = vmatprep.mubr.bf16.mxu0 %v508
  %810 = vmatmul.mubr.bf16.gmra.mrb[0].mxu0 %v613
  %v811 = vpop.f32.mrb[0].mxu0
  %v812 = vadd.f32 %v655, %v811
  %v813 = vpop.f32.mrb[0].mxu0
  %v814 = vpop.f32.mrb[0].mxu0
  %v815 = vadd.f32 %v655, %v814
  %v816 = vpop.f32.mrb[0].mxu0
  %817 = vmatprep.mubr.bf16.mxu0 %v509
  %818 = vmatmul.mubr.bf16.gmra.mrb[0].mxu0 %v614
  %v819 = vpop.f32.mrb[0].mxu0
  %v820 = vadd.f32 %v655, %v819
  %v821 = vpop.f32.mrb[0].mxu0
  %v822 = vpop.f32.mrb[0].mxu0
  %v823 = vadd.f32 %v655, %v822
  %v824 = vpop.f32.mrb[0].mxu0
  %825 = vmatprep.mubr.bf16.mxu0 %v510
  %826 = vmatmul.mubr.bf16.gmra.mrb[0].mxu0 %v615
  %v827 = vpop.f32.mrb[0].mxu0
  %v828 = vadd.f32 %v655, %v827
  %v829 = vpop.f32.mrb[0].mxu0
  %v830 = vpop.f32.mrb[0].mxu0
  %v831 = vadd.f32 %v655, %v830
  %v832 = vpop.f32.mrb[0].mxu0
  %833 = vmatprep.mubr.bf16.mxu0 %v511
  %834 = vmatmul.mubr.bf16.gmra.mrb[0].mxu0 %v616
  %v835 = vpop.f32.mrb[0].mxu0
  %v836 = vadd.f32 %v655, %v835
  %v837 = vpop.f32.mrb[0].mxu0
  %v838 = vpop.f32.mrb[0].mxu0
  %v839 = vadd.f32 %v655, %v838
  %v840 = vpop.f32.mrb[0].mxu0
  %841 = vmatprep.mubr.bf16.mxu0 %v512
  %842 = vmatmul.mubr.bf16.gmra.mrb[0].mxu0 %v617
  %v843 = vpop.f32.mrb[0].mxu0
  %v844 = vadd.f32 %v655, %v843
  %v845 = vpop.f32.mrb[0].mxu0
  %v846 = vpop.f32.mrb[0].mxu0
  %v847 = vadd.f32 %v655, %v846
  %v848 = vpop.f32.mrb[0].mxu0
  %849 = vdwg.mxu0
  %v850 = vmax.f32 %v788, 0.0
  %v851 = vmax.f32 %v791, 0.0
  %v852 = vmax.f32 %v796, 0.0
  %v853 = vmax.f32 %v799, 0.0
  %v854 = vmax.f32 %v804, 0.0
  %v855 = vmax.f32 %v807, 0.0
  %v856 = vmax.f32 %v812, 0.0
  %v857 = vmax.f32 %v815, 0.0
  %v858 = vmax.f32 %v820, 0.0
  %v859 = vmax.f32 %v823, 0.0
  %v860 = vmax.f32 %v828, 0.0
  %v861 = vmax.f32 %v831, 0.0
  %v862 = vmax.f32 %v836, 0.0
  %v863 = vmax.f32 %v839, 0.0
  %v864 = vmax.f32 %v844, 0.0
  %v865 = vmax.f32 %v847, 0.0
  %866 = vst [vmem:[%s6] sm:$0xff] %v850
  %867 = vst [vmem:[%s6 + $0x8] sm:$0xff] %v851
  %868 = vst [vmem:[%s6 + $0x10] sm:$0xff] %v852
  %869 = vst [vmem:[%s6 + $0x18] sm:$0xff] %v853
  %870 = vst [vmem:[%s6 + $0x20] sm:$0xff] %v854
  %871 = vst [vmem:[%s6 + $0x28] sm:$0xff] %v855
  %872 = vst [vmem:[%s6 + $0x30] sm:$0xff] %v856
  %873 = vst [vmem:[%s6 + $0x38] sm:$0xff] %v857
  %874 = vst [vmem:[%s6 + $0x40] sm:$0xff] %v858
  %875 = vst [vmem:[%s6 + $0x48] sm:$0xff] %v859
  %876 = vst [vmem:[%s6 + $0x50] sm:$0xff] %v860
  %877 = vst [vmem:[%s6 + $0x58] sm:$0xff] %v861
  %878 = vst [vmem:[%s6 + $0x60] sm:$0xff] %v862
  %879 = vst [vmem:[%s6 + $0x68] sm:$0xff] %v863
  %880 = vst [vmem:[%s6 + $0x70] sm:$0xff] %v864
  %881 = vst [vmem:[%s6 + $0x78] sm:$0xff] %v865
  // Predicated region
  $region26: #{sage_forward.1} parent=0 // pred_check
    _
  $region27: #{sage_forward.1} parent=0 // pred_check_branch
    %883 = sbr.rel (0) target = $region29
  $region28: #{sage_forward.1} parent=0 // pred_region
    _
  $region29: #{sage_forward.1} parent=0 // pred_fallthru
    _
  // Predicated region
  $region30: #{sage_forward.1} parent=0 // pred_check
    _
  $region31: #{sage_forward.1} parent=0 // pred_check_branch
    %885 = sbr.rel (0) target = $region33
  $region32: #{sage_forward.1} parent=0 // pred_region
    _
  $region33: #{sage_forward.1} parent=0 // pred_fallthru
    _

</llo_original>
